<compile_context>
chip_gen: v7x
topology: tpu7x:2x2x1
jax: 0.10.0
libtpu: 0.0.40
codegen_flags: <defaults>
</compile_context>

<pallas_src>
import jax
import jax.numpy as jnp
from jax.experimental import pallas as pl
from jax.experimental.pallas import tpu as pltpu


def _round_up(x: int, m: int) -> int:
    return ((x + m - 1) // m) * m


def ret_head_kernel(cls_ref, w_ref, b_ref, o_ref):
    """cls_ref: [TB, H] VMEM, w_ref: [1, H] VMEM, b_ref: [1] SMEM, o_ref: [TB, 1] VMEM."""
    # Upcast (no-op for f32 inputs; keeps the 1024-term reduction in f32 for bf16).
    cls = cls_ref[...].astype(jnp.float32)            # [TB, H]
    w = w_ref[...].astype(jnp.float32)                # [1, H]  (broadcast over TB sublanes)
    # logit[b, 0] = sum_h cls[b, h] * w[0, h] + bias   (Linear(H, 1); N=1 -> VPU + XLU)
    o_ref[...] = jnp.sum(cls * w, axis=-1, keepdims=True) + b_ref[0]


def ret_model_head(last_hidden_state, weight, bias, *, block_b=256):
    """last_hidden_state: [B, S, H], weight: [1, H], bias: [1]. Returns [B, 1] f32."""
    B, S, H = last_hidden_state.shape
    assert weight.shape == (1, H) and bias.shape == (1,)
    assert H % 128 == 0, "hidden size must be lane-aligned (1024 per the module)"

    # CLS extraction in the wrapper: only B*H elements ever reach the kernel.
    cls = last_hidden_state[:, 0, :]                  # [B, H]

    # Batch tile: multiple of 8 (sublane), capped at block_b; pad B up to a
    # whole number of tiles so the BlockSpec stays (8,128)-aligned.
    tb = min(_round_up(block_b, 8), _round_up(B, 8))
    b_pad = _round_up(B, tb)
    if b_pad != B:
        cls = jnp.pad(cls, ((0, b_pad - B), (0, 0)))

    out = pl.pallas_call(
        ret_head_kernel,
        out_shape=jax.ShapeDtypeStruct((b_pad, 1), jnp.float32),
        grid=(b_pad // tb,),
        in_specs=[
            pl.BlockSpec((tb, H), lambda i: (i, 0)),                 # CLS tile (pipelined)
            pl.BlockSpec((1, H), lambda i: (0, 0)),                  # weight (resident)
            pl.BlockSpec(memory_space=pltpu.MemorySpace.SMEM),       # bias scalar
        ],
        out_specs=pl.BlockSpec((tb, 1), lambda i: (i, 0)),
        compiler_params=pltpu.CompilerParams(
            dimension_semantics=("parallel",)),                      # v7x: 2-TC shard
    )(cls, weight, bias)
    return out[:B]


if __name__ == "__main__":
    # Hidden size fixed at 1024 by Linear(1024, 1); small B, S for the test.
    B, S, H = 2, 8, 1024

    key = jax.random.PRNGKey(0)
    k_hidden, k_w, k_b = jax.random.split(key, 3)

    # TODO(synk): the injected `encoder` module itself is opaque; its output
    # `last_hidden_state` is synthesized deterministically instead.
    last_hidden_state = jax.random.normal(k_hidden, (B, S, H), dtype=jnp.float32)

    # Deterministic Linear(1024, 1) params (torch default: U(-1/sqrt(H), 1/sqrt(H))).
    bound = 1.0 / jnp.sqrt(jnp.float32(H))
    weight = jax.random.uniform(k_w, (1, H), jnp.float32, -bound, bound)
    bias = jax.random.uniform(k_b, (1,), jnp.float32, -bound, bound)

    logit = ret_model_head(last_hidden_state, weight, bias)
    logit = jax.block_until_ready(logit)

    # Pure-JAX reference of the same forward pass.
    ref = last_hidden_state[:, 0, :] @ weight.T + bias[0]
    assert logit.shape == (B, 1)
    assert jnp.allclose(logit, ref, atol=1e-5, rtol=1e-5)

    # Second check: non-multiple-of-8 batch + multi-step parallel grid (padding path).
    B2 = 20
    h2 = jax.random.normal(jax.random.PRNGKey(1), (B2, S, H), dtype=jnp.float32)
    logit2 = jax.block_until_ready(ret_model_head(h2, weight, bias, block_b=8))
    ref2 = h2[:, 0, :] @ weight.T + bias[0]
    assert logit2.shape == (B2, 1)
    assert jnp.allclose(logit2, ref2, atol=1e-5, rtol=1e-5)

    # Third check: bf16 encoder output, f32 accumulation inside the kernel.
    h3 = last_hidden_state.astype(jnp.bfloat16)
    logit3 = jax.block_until_ready(ret_model_head(h3, weight, bias))
    ref3 = h3[:, 0, :].astype(jnp.float32) @ weight.T + bias[0]
    assert jnp.allclose(logit3, ref3, atol=1e-2, rtol=1e-2)

    print("KERNEL_OK")
</pallas_src>

<mosaic_0001>
module attributes {stable_mosaic.version = 11 : i64} {
  func.func @ret_head_kernel(%arg0: i32, %arg1: memref<8x1024xf32, #tpu.memory_space<vmem>>, %arg2: memref<1x1024xf32, #tpu.memory_space<vmem>>, %arg3: memref<1xf32, #tpu.memory_space<smem>>, %arg4: memref<8x1xf32, #tpu.memory_space<vmem>>) attributes {dimension_semantics = [#tpu.dimension_semantics<parallel>], iteration_bounds = array<i64: 1>, scalar_prefetch = 0 : i64, scratch_operands = 0 : i64, tpu.core_type = #tpu.core_type<tc>, window_params = [{transform_indices = @transform_0, window_bounds = array<i64: 8, 1024>}, {pipeline_mode = #tpu.pipeline_mode<synchronous>, transform_indices = @transform_1, window_bounds = array<i64: 1, 1024>}, {transform_indices = @transform_2, window_bounds = array<i64: 1>}, {transform_indices = @transform_3, window_bounds = array<i64: 8, 1>}]} {
    %c0 = arith.constant 0 : index
    %c0_0 = arith.constant 0 : index
    %0 = vector.load %arg1[%c0, %c0_0] : memref<8x1024xf32, #tpu.memory_space<vmem>>, vector<8x1024xf32>
    %c0_1 = arith.constant 0 : index
    %c0_2 = arith.constant 0 : index
    %1 = vector.load %arg2[%c0_1, %c0_2] : memref<1x1024xf32, #tpu.memory_space<vmem>>, vector<1x1024xf32>
    %2 = vector.broadcast %1 : vector<1x1024xf32> to vector<8x1024xf32>
    %3 = arith.mulf %0, %2 : vector<8x1024xf32>
    %cst = arith.constant dense<0.000000e+00> : vector<8xf32>
    %4 = vector.multi_reduction <add>, %3, %cst [1] : vector<8x1024xf32> to vector<8xf32>
    %5 = vector.shape_cast %4 : vector<8xf32> to vector<8x1xf32>
    %c0_3 = arith.constant 0 : index
    %6 = memref.load %arg3[%c0_3] : memref<1xf32, #tpu.memory_space<smem>>
    %7 = vector.broadcast %6 : f32 to vector<8x1xf32>
    %8 = arith.addf %5, %7 : vector<8x1xf32>
    %c0_4 = arith.constant 0 : index
    %c0_5 = arith.constant 0 : index
    %9 = vector.load %arg4[%c0_4, %c0_5] : memref<8x1xf32, #tpu.memory_space<vmem>>, vector<8x1xf32>
    tpu.vector_store %arg4[%c0_4, %c0_5], %8 {strides = array<i32>} : memref<8x1xf32, #tpu.memory_space<vmem>>, vector<8x1xf32>,
    return
  }
  func.func @transform_0(%arg0: i32) -> (i32, i32) {
    %c0_i32 = arith.constant 0 : i32
    %c0_i32_0 = arith.constant 0 : i32
    return %arg0, %c0_i32 : i32, i32
  }
  func.func @transform_1(%arg0: i32) -> (i32, i32) {
    %c0_i32 = arith.constant 0 : i32
    %c0_i32_0 = arith.constant 0 : i32
    %c0_i32_1 = arith.constant 0 : i32
    return %c0_i32, %c0_i32_0 : i32, i32
  }
  func.func @transform_2(%arg0: i32) -> i32 {
    %c0_i32 = arith.constant 0 : i32
    %c0_i32_0 = arith.constant 0 : i32
    return %c0_i32 : i32
  }
  func.func @transform_3(%arg0: i32) -> (i32, i32) {
    %c0_i32 = arith.constant 0 : i32
    %c0_i32_0 = arith.constant 0 : i32
    return %arg0, %c0_i32 : i32, i32
  }
}

</mosaic_0001>

<llo_original>
// kernel: tpu_custom_call.1
$region0: #{tpu_custom_call.1}
  #allocation0 [shape = 'u32[]', space=smem, size = 0x4, offset = 0x4, fixed_abs, tag = 'smem constant byte address 0x4 - core index']
  #allocation1 [shape = 'u32[144,128]{1,0:T(1,128)}', space=vmem, size = 0x12000, scoped, tag = 'internal scratch']
  #allocation2 [shape = 'f32[1]{0:T(128)S(6)}', space=smem, size = 0x200, scoped, tag = 'scoped memory for tpu_custom_call.1']
  %s0 = inlined_call_operand.hbm [shape: f32[8,1024], index: 0, kind: input, shape index: {}]
  %s1 = inlined_call_operand.hbm [shape: f32[1,1024], index: 1, kind: input, shape index: {}]
  %s2 = inlined_call_operand.<no memory space> [shape: f32[1], index: 2, kind: input, shape index: {}]
  %s3 = inlined_call_operand.vmem [shape: f32[8,1], index: 3, kind: output, shape index: {}]
  %s4 = sld [smem:[#allocation0]]
  $region30: #{tpu_custom_call.1} parent=0
    _
  %s6 = ssub.s32 1, %s4
  %s7 = scalar_select 0, %s6, %s4
  %8 = sst [smem:[#allocation2]] %s2
  $region1: #{tpu_custom_call.1} parent=0
    #allocation3 [shape = 'u8[32768]{0}', space=vmem, size = 0x8000, scoped, tag = 'input window, operand 0, single buffered']
    #allocation4 [shape = 's32[1]{0}', space=sflag, size = 0x4, scoped, tag = 'scoped memory for tpu_custom_call.1']
    #allocation5 [shape = 'u8[4096]{0}', space=vmem, size = 0x1000, scoped, tag = 'input window, operand 1, single buffered']
    #allocation6 [shape = 's32[1]{0}', space=sflag, size = 0x4, scoped, tag = 'scoped memory for tpu_custom_call.1']
    %9 = vsyncpa [#allocation4], 0
    %10 = vsyncpa [#allocation6], 0
    // Predicated region
    $region2: #{tpu_custom_call.1} parent=1 // pred_check
      _
    $region3: #{tpu_custom_call.1} parent=1 // pred_check_branch
      %12 = sbr.rel (0) target = $region5
    $region4: #{tpu_custom_call.1} parent=1 // pred_region
      %s14 = ssub.s32 1024, 1024
      %15 = vsyncadd [#allocation4], %s14
      %s17 = sshll.u32 [#allocation3], 4
      %s18 = int_to_ptr.vmem [resolvable:$true] %s17
      %20 = dma.hbm_to_vmem [thread:$0]  %s0, 1024, %s18, [#allocation4]
    $region5: #{tpu_custom_call.1} parent=1 // pred_fallthru
      _
    // Predicated region
    $region6: #{tpu_custom_call.1} parent=1 // pred_check
      _
    $region7: #{tpu_custom_call.1} parent=1 // pred_check_branch
      %22 = sbr.rel (0) target = $region9
    $region8: #{tpu_custom_call.1} parent=1 // pred_region
      %s24 = ssub.s32 128, 128
      %25 = vsyncadd [#allocation6], %s24
      %s27 = sshll.u32 [#allocation5], 4
      %s28 = int_to_ptr.vmem [resolvable:$true] %s27
      %30 = dma.hbm_to_vmem [thread:$0]  %s1, 128, %s28, [#allocation6]
    $region9: #{tpu_custom_call.1} parent=1 // pred_fallthru
      _
    // Predicated region
    $region10: #{tpu_custom_call.1} parent=1 // pred_check
      _
    $region11: #{tpu_custom_call.1} parent=1 // pred_check_branch
      %32 = sbr.rel (0) target = $region13
    $region12: #{tpu_custom_call.1} parent=1 // pred_region
      _
    $region13: #{tpu_custom_call.1} parent=1 // pred_fallthru
      _
    // Predicated region
    $region14: #{tpu_custom_call.1} parent=1 // pred_check
      _
    $region15: #{tpu_custom_call.1} parent=1 // pred_check_branch
      %34 = sbr.rel (0) target = $region17
    $region16: #{tpu_custom_call.1} parent=1 // pred_region
      %35 = dma.done [#allocation4], 1024
    $region17: #{tpu_custom_call.1} parent=1 // pred_fallthru
      _
    // Predicated region
    $region18: #{tpu_custom_call.1} parent=1 // pred_check
      _
    $region19: #{tpu_custom_call.1} parent=1 // pred_check_branch
      %37 = sbr.rel (0) target = $region21
    $region20: #{tpu_custom_call.1} parent=1 // pred_region
      %38 = dma.done [#allocation6], 128
    $region21: #{tpu_custom_call.1} parent=1 // pred_fallthru
      _
    %v39 = vld [vmem:[#allocation3] sm:$0xff]
    %v40 = vld [vmem:[#allocation3 + $0x8] sm:$0xff]
    %v41 = vld [vmem:[#allocation3 + $0x10] sm:$0xff]
    %v42 = vld [vmem:[#allocation3 + $0x18] sm:$0xff]
    %v43 = vld [vmem:[#allocation3 + $0x20] sm:$0xff]
    %v44 = vld [vmem:[#allocation3 + $0x28] sm:$0xff]
    %v45 = vld [vmem:[#allocation3 + $0x30] sm:$0xff]
    %v46 = vld [vmem:[#allocation3 + $0x38] sm:$0xff]
    %v47 = vld [vmem:[#allocation5] sm:$0xff]
    %v49 = vlaneseq
    %v50 = vshrl.u32 %v49, 7
    %v51 = vsub.s32 0, %v50
    %v52 = vrot.slane %v47, %v51
    %v53 = vlaneseq
    %v54 = vshrl.u32 %v53, 7
    %v55 = vsub.s32 1, %v54
    %v56 = vrot.slane %v47, %v55
    %v57 = vlaneseq
    %v58 = vshrl.u32 %v57, 7
    %v59 = vsub.s32 2, %v58
    %v60 = vrot.slane %v47, %v59
    %v61 = vlaneseq
    %v62 = vshrl.u32 %v61, 7
    %v63 = vsub.s32 3, %v62
    %v64 = vrot.slane %v47, %v63
    %v65 = vlaneseq
    %v66 = vshrl.u32 %v65, 7
    %v67 = vsub.s32 4, %v66
    %v68 = vrot.slane %v47, %v67
    %v69 = vlaneseq
    %v70 = vshrl.u32 %v69, 7
    %v71 = vsub.s32 5, %v70
    %v72 = vrot.slane %v47, %v71
    %v73 = vlaneseq
    %v74 = vshrl.u32 %v73, 7
    %v75 = vsub.s32 6, %v74
    %v76 = vrot.slane %v47, %v75
    %v77 = vlaneseq
    %v78 = vshrl.u32 %v77, 7
    %v79 = vsub.s32 7, %v78
    %v80 = vrot.slane %v47, %v79
    %v89 = vmul.f32 %v39, %v52
    %v90 = vmul.f32 %v40, %v56
    %v91 = vmul.f32 %v41, %v60
    %v92 = vmul.f32 %v42, %v64
    %v93 = vmul.f32 %v43, %v68
    %v94 = vmul.f32 %v44, %v72
    %v95 = vmul.f32 %v45, %v76
    %v96 = vmul.f32 %v46, %v80
    %v97 = vadd.f32 %v89, %v90
    %v98 = vadd.f32 %v97, %v91
    %v99 = vadd.f32 %v98, %v92
    %v100 = vadd.f32 %v99, %v93
    %v101 = vadd.f32 %v100, %v94
    %v102 = vadd.f32 %v101, %v95
    %v103 = vadd.f32 %v102, %v96
    %104 = vadd.xlane.f32.xlu0 %v103
    %v105 = vpop.xlane.xlu0 %104
    %s106 = sld [smem:[#allocation2]]
    %v107 = vstv %s106
    %v108 = vadd.f32 %v105, %v107
    %vm109 = vcmask 7168
    %110 = vst.msk [vmem:[%s3] sm:$0xff] %vm109, %v108
    // Predicated region
    $region22: #{tpu_custom_call.1} parent=1 // pred_check
      _
    $region23: #{tpu_custom_call.1} parent=1 // pred_check_branch
      %112 = sbr.rel (0) target = $region25
    $region24: #{tpu_custom_call.1} parent=1 // pred_region
      _
    $region25: #{tpu_custom_call.1} parent=1 // pred_fallthru
      _
    // Predicated region
    $region26: #{tpu_custom_call.1} parent=1 // pred_check
      _
    $region27: #{tpu_custom_call.1} parent=1 // pred_check_branch
      %114 = sbr.rel (0) target = $region29
    $region28: #{tpu_custom_call.1} parent=1 // pred_region
      _
    $region29: #{tpu_custom_call.1} parent=1 // pred_fallthru
      _
    %115 = vsyncpa [#allocation4], 1
    %116 = vsyncpa [#allocation6], 1

</llo_original>
